<compile_context>
chip_gen: v7x
topology: tpu7x:2x2x1
jax: 0.10.0
libtpu: 0.0.40
codegen_flags: <defaults>
</compile_context>

<pallas_src>
import functools

import jax
import jax.numpy as jnp
from jax import lax
from jax.experimental import pallas as pl
from jax.experimental.pallas import tpu as pltpu


# ------------------------------ RMSNorm kernel -------------------------------
def _rmsnorm_kernel(x_ref, w_ref, o_ref, *, eps):
    # x_ref : (block_rows, d)   one row-tile of the (flattened) input
    # w_ref : (1, d)            the RMSNorm weight, broadcast over rows
    # Rows are fully independent, so garbage rows in a ragged last block are
    # harmless: the partial output block is masked on store.
    x = x_ref[...].astype(jnp.float32)
    ms = jnp.mean(x * x, axis=-1, keepdims=True)             # (block_rows, 1)
    inv = lax.rsqrt(ms + eps)                                 # EUP, f32
    w = w_ref[...].astype(jnp.float32)                        # (1, d)
    o_ref[...] = (x * inv * w).astype(o_ref.dtype)


def rmsnorm(x, weight, eps=1e-5, target_tile_bytes=4 * 1024 * 1024):
    """output = x * rsqrt(mean(x**2, -1, keepdims=True) + eps) * weight.

    Works for any leading shape; the last dim is the feature dim (d_model).
    Implemented as a single pallas_call tiled over rows, ragged tail handled
    by Pallas's masked partial blocks (no pad / slice HBM round-trips).
    """
    orig_shape = x.shape
    d = orig_shape[-1]
    x2 = x.reshape(-1, d)
    n = x2.shape[0]
    itemsize = x2.dtype.itemsize

    # Dtype-correct sublane multiple: 8 for f32, 16 for bf16, 32 for int8/fp8.
    sublane = max(8, 32 // itemsize)

    # Byte-budget row tile: ~target_tile_bytes of input per grid step
    # (so ~4 live tiles with double-buffered in+out), rounded to the sublane
    # multiple and clamped so the block never wildly exceeds the row count.
    br = target_tile_bytes // (itemsize * d)
    br = max(sublane, (br // sublane) * sublane)
    n_ceil = ((n + sublane - 1) // sublane) * sublane
    br = min(br, n_ceil)

    grid = (pl.cdiv(n, br),)

    w2 = weight.reshape(1, d)

    cost = pl.CostEstimate(
        flops=4 * n * d,                 # square + reduce + 2 multiplies
        transcendentals=n,               # one rsqrt per row
        bytes_accessed=2 * n * d * itemsize + d * weight.dtype.itemsize,
    )

    out = pl.pallas_call(
        functools.partial(_rmsnorm_kernel, eps=eps),
        out_shape=jax.ShapeDtypeStruct((n, d), x.dtype),
        grid=grid,
        in_specs=[
            pl.BlockSpec((br, d), lambda i: (i, 0)),   # row tile of x
            pl.BlockSpec((1, d), lambda i: (0, 0)),    # weight (resident)
        ],
        out_specs=pl.BlockSpec((br, d), lambda i: (i, 0)),
        compiler_params=pltpu.CompilerParams(
            # Single row axis; 'parallel' lets v7x shard it across both TCs,
            # no-op on v5e/v6e.
            dimension_semantics=("parallel",),
            # Headroom for double-buffered ~4 MiB tiles; raises v5e's 16 MiB
            # default, matches v6e/v7x defaults (well under physical VMEM).
            vmem_limit_bytes=32 * 1024 * 1024,
        ),
        cost_estimate=cost,
    )(x2, w2)

    return out.reshape(orig_shape)


# ------------------------------ reference ------------------------------------
def rmsnorm_ref(x, weight, eps=1e-5):
    ms = jnp.mean(x.astype(jnp.float32) ** 2, axis=-1, keepdims=True)
    return (x.astype(jnp.float32) * lax.rsqrt(ms + eps) * weight).astype(x.dtype)


# ----------------------------------- main ------------------------------------
if __name__ == "__main__":
    key = jax.random.PRNGKey(0)
    kx, kw, kx2 = jax.random.split(key, 3)

    # Small shape consistent with the module (d_model=128, a handful of rows).
    B, S, D = 2, 8, 128
    x = jax.random.normal(kx, (B, S, D), jnp.float32)
    weight = jnp.ones((D,), jnp.float32) + 0.01 * jax.random.normal(kw, (D,), jnp.float32)

    out = jax.block_until_ready(rmsnorm(x, weight))
    assert out.shape == x.shape
    assert bool(jnp.all(jnp.isfinite(out)))
    assert bool(jnp.allclose(out, rmsnorm_ref(x, weight), atol=1e-5, rtol=1e-5))

    # Single-step ragged block: 1300 rows in one (1304, 128) partial block.
    x_big = jax.random.normal(kx2, (1300, D), jnp.float32)
    out_big = jax.block_until_ready(rmsnorm(x_big, weight))
    assert out_big.shape == x_big.shape
    assert bool(jnp.all(jnp.isfinite(out_big)))
    assert bool(jnp.allclose(out_big, rmsnorm_ref(x_big, weight),
                             atol=1e-5, rtol=1e-5))

    # Multi-step grid with a ragged last block (small tile budget -> 128-row
    # tiles -> 11 grid steps, last block 36 valid rows).
    out_big2 = jax.block_until_ready(
        rmsnorm(x_big, weight, target_tile_bytes=64 * 1024))
    assert bool(jnp.allclose(out_big2, rmsnorm_ref(x_big, weight),
                             atol=1e-5, rtol=1e-5))

    print("KERNEL_OK")
</pallas_src>

<mosaic_0001>
module attributes {stable_mosaic.version = 11 : i64} {
  func.func @_rmsnorm_kernel(%arg0: i32, %arg1: memref<16x128xf32, #tpu.memory_space<vmem>>, %arg2: memref<1x128xf32, #tpu.memory_space<vmem>>, %arg3: memref<16x128xf32, #tpu.memory_space<vmem>>) attributes {dimension_semantics = [#tpu.dimension_semantics<parallel>], iteration_bounds = array<i64: 1>, scalar_prefetch = 0 : i64, scratch_operands = 0 : i64, tpu.core_type = #tpu.core_type<tc>, window_params = [{transform_indices = @transform_0, window_bounds = array<i64: 16, 128>}, {pipeline_mode = #tpu.pipeline_mode<synchronous>, transform_indices = @transform_1, window_bounds = array<i64: 1, 128>}, {transform_indices = @transform_2, window_bounds = array<i64: 16, 128>}]} {
    %c0 = arith.constant 0 : index
    %c0_0 = arith.constant 0 : index
    %0 = vector.load %arg1[%c0, %c0_0] : memref<16x128xf32, #tpu.memory_space<vmem>>, vector<16x128xf32>
    %1 = arith.mulf %0, %0 : vector<16x128xf32>
    %cst = arith.constant dense<0.000000e+00> : vector<16xf32>
    %2 = vector.multi_reduction <add>, %1, %cst [1] : vector<16x128xf32> to vector<16xf32>
    %3 = vector.shape_cast %2 : vector<16xf32> to vector<16x1xf32>
    %cst_1 = arith.constant 1.280000e+02 : f32
    %4 = vector.broadcast %cst_1 : f32 to vector<16x1xf32>
    %5 = arith.divf %3, %4 : vector<16x1xf32>
    %cst_2 = arith.constant 9.99999974E-6 : f32
    %6 = vector.broadcast %cst_2 : f32 to vector<16x1xf32>
    %7 = arith.addf %5, %6 : vector<16x1xf32>
    %8 = math.rsqrt %7 : vector<16x1xf32>
    %c0_3 = arith.constant 0 : index
    %c0_4 = arith.constant 0 : index
    %9 = vector.load %arg2[%c0_3, %c0_4] : memref<1x128xf32, #tpu.memory_space<vmem>>, vector<1x128xf32>
    %10 = vector.broadcast %8 : vector<16x1xf32> to vector<16x128xf32>
    %11 = arith.mulf %0, %10 : vector<16x128xf32>
    %12 = vector.broadcast %9 : vector<1x128xf32> to vector<16x128xf32>
    %13 = arith.mulf %11, %12 : vector<16x128xf32>
    %c0_5 = arith.constant 0 : index
    %c0_6 = arith.constant 0 : index
    %14 = vector.load %arg3[%c0_5, %c0_6] : memref<16x128xf32, #tpu.memory_space<vmem>>, vector<16x128xf32>
    tpu.vector_store %arg3[%c0_5, %c0_6], %13 {strides = array<i32>} : memref<16x128xf32, #tpu.memory_space<vmem>>, vector<16x128xf32>,
    return
  }
  func.func @transform_0(%arg0: i32) -> (i32, i32) {
    %c0_i32 = arith.constant 0 : i32
    %c0_i32_0 = arith.constant 0 : i32
    return %arg0, %c0_i32 : i32, i32
  }
  func.func @transform_1(%arg0: i32) -> (i32, i32) {
    %c0_i32 = arith.constant 0 : i32
    %c0_i32_0 = arith.constant 0 : i32
    %c0_i32_1 = arith.constant 0 : i32
    return %c0_i32, %c0_i32_0 : i32, i32
  }
  func.func @transform_2(%arg0: i32) -> (i32, i32) {
    %c0_i32 = arith.constant 0 : i32
    %c0_i32_0 = arith.constant 0 : i32
    return %arg0, %c0_i32 : i32, i32
  }
}

</mosaic_0001>

<llo_original>
// kernel: tpu_custom_call.1
$region0: #{tpu_custom_call.1}
  #allocation0 [shape = 'u32[]', space=smem, size = 0x4, offset = 0x4, fixed_abs, tag = 'smem constant byte address 0x4 - core index']
  #allocation1 [shape = 'u32[144,128]{1,0:T(1,128)}', space=vmem, size = 0x12000, scoped, tag = 'internal scratch']
  %s0 = inlined_call_operand.hbm [shape: f32[16,128], index: 0, kind: input, shape index: {}]
  %s1 = inlined_call_operand.vmem [shape: f32[1,128], index: 1, kind: input, shape index: {}]
  %s2 = inlined_call_operand.hbm [shape: f32[16,128], index: 2, kind: output, shape index: {}]
  %s3 = sld [smem:[#allocation0]]
  $region22: #{tpu_custom_call.1} parent=0
    _
  %s5 = ssub.s32 1, %s3
  %s6 = scalar_select 0, %s5, %s3
  $region1: #{tpu_custom_call.1} parent=0
    #allocation2 [shape = 'u8[8192]{0}', space=vmem, size = 0x2000, scoped, tag = 'input window, operand 0, single buffered']
    #allocation3 [shape = 's32[1]{0}', space=sflag, size = 0x4, scoped, tag = 'scoped memory for tpu_custom_call.1']
    #allocation4 [shape = 's32[1]{0}', space=sflag, size = 0x4, scoped, tag = 'scoped memory for tpu_custom_call.1']
    #allocation5 [shape = 'u8[8192]{0}', space=vmem, size = 0x2000, scoped, tag = 'output window, operand 0, single buffered']
    %7 = vsyncpa [#allocation3], 0
    %8 = vsyncpa [#allocation4], 0
    // Predicated region
    $region2: #{tpu_custom_call.1} parent=1 // pred_check
      _
    $region3: #{tpu_custom_call.1} parent=1 // pred_check_branch
      %10 = sbr.rel (0) target = $region5
    $region4: #{tpu_custom_call.1} parent=1 // pred_region
      %s12 = ssub.s32 256, 256
      %13 = vsyncadd [#allocation3], %s12
      %s14 = sshll.u32 [#allocation2], 4
      %s15 = int_to_ptr.vmem [resolvable:$true] %s14
      %20 = dma.hbm_to_vmem [thread:$0]  %s0, 256, %s15, [#allocation3], 128, 128, 8
    $region5: #{tpu_custom_call.1} parent=1 // pred_fallthru
      _
    // Predicated region
    $region6: #{tpu_custom_call.1} parent=1 // pred_check
      _
    $region7: #{tpu_custom_call.1} parent=1 // pred_check_branch
      %22 = sbr.rel (0) target = $region9
    $region8: #{tpu_custom_call.1} parent=1 // pred_region
      _
    $region9: #{tpu_custom_call.1} parent=1 // pred_fallthru
      _
    // Predicated region
    $region10: #{tpu_custom_call.1} parent=1 // pred_check
      _
    $region11: #{tpu_custom_call.1} parent=1 // pred_check_branch
      %24 = sbr.rel (0) target = $region13
    $region12: #{tpu_custom_call.1} parent=1 // pred_region
      %25 = dma.done [#allocation3], 256
    $region13: #{tpu_custom_call.1} parent=1 // pred_fallthru
      _
    %v26 = vld [vmem:[#allocation2] sm:$0xff]
    %v27 = vld [vmem:[#allocation2 + $0x8] sm:$0xff]
    %v28 = vmul.f32 %v26, %v26
    %v29 = vmul.f32 %v27, %v27
    %30 = vadd.xlane.f32.xlu0 %v28
    %v31 = vpop.xlane.xlu0 %30
    %32 = vadd.xlane.f32.xlu0 %v29
    %v33 = vpop.xlane.xlu0 %32
    %v34 = vrcp.pop 128.0
    %v35 = vmul.f32 %v31, %v34
    %v36 = vmul.f32 %v33, %v34
    %v37 = vadd.f32 %v35, 1e-05
    %v38 = vadd.f32 %v36, 1e-05
    %v39 = vrsqrt.pop %v37
    %v40 = vrsqrt.pop %v38
    %v41 = vld [vmem:[%s1] sm:$0x1]
    %v42 = vmul.f32 %v26, %v39
    %v43 = vmul.f32 %v27, %v40
    %v45 = vlaneseq
    %v46 = vshrl.u32 %v45, 7
    %v47 = vsub.s32 0, %v46
    %v48 = vrot.slane %v41, %v47
    %v50 = vmul.f32 %v42, %v48
    %v51 = vmul.f32 %v43, %v48
    %52 = vst [vmem:[#allocation5] sm:$0xff] %v50
    %53 = vst [vmem:[#allocation5 + $0x8] sm:$0xff] %v51
    // Predicated region
    $region14: #{tpu_custom_call.1} parent=1 // pred_check
      _
    $region15: #{tpu_custom_call.1} parent=1 // pred_check_branch
      %55 = sbr.rel (0) target = $region17
    $region16: #{tpu_custom_call.1} parent=1 // pred_region
      %s57 = ssub.s32 256, 256
      %58 = vsyncadd [#allocation4], %s57
      %s59 = sshll.u32 [#allocation5], 4
      %s60 = int_to_ptr.vmem [resolvable:$true] %s59
      %65 = dma.vmem_to_hbm [thread:$0]  %s60, 256, %s2, [#allocation4], 128, 128, 8
    $region17: #{tpu_custom_call.1} parent=1 // pred_fallthru
      _
    // Predicated region
    $region18: #{tpu_custom_call.1} parent=1 // pred_check
      _
    $region19: #{tpu_custom_call.1} parent=1 // pred_check_branch
      %67 = sbr.rel (0) target = $region21
    $region20: #{tpu_custom_call.1} parent=1 // pred_region
      %68 = dma.done [#allocation4], 256
    $region21: #{tpu_custom_call.1} parent=1 // pred_fallthru
      _
    %69 = vsyncpa [#allocation3], 1
    %70 = vsyncpa [#allocation4], 1

</llo_original>
